<compile_context>
chip_gen: v7x
topology: tpu7x:2x2x1
jax: 0.10.0
libtpu: 0.0.40
codegen_flags: <defaults>
</compile_context>

<pallas_src>
import jax
import jax.numpy as jnp
from jax.experimental import pallas as pl
from jax.experimental.pallas import tpu as pltpu


def _round_up(n: int, m: int) -> int:
    return ((n + m - 1) // m) * m


def _make_crossnet_kernel(num_layers: int):
    def crossnet_kernel(x_ref, w_ref, b_ref, o_ref, acc_ref):
        # x_ref : [TB, F] (I/O dtype)   w_ref, b_ref : [L, F] f32
        # o_ref : [TB, F] (I/O dtype)   acc_ref      : [TB, F] f32 VMEM scratch
        acc_ref[...] = x_ref[...].astype(jnp.float32)          # x_l <- x_0
        for l in range(num_layers):                            # small static L
            x_l = acc_ref[...]
            w = w_ref[pl.ds(l, 1), :]                          # [1, F]
            b = b_ref[pl.ds(l, 1), :]                          # [1, F]
            # per-row dot (W_l . x_l): VPU multiply + XLU lane reduce -> [TB, 1]
            s = jnp.sum(x_l * w, axis=-1, keepdims=True)
            # x_{l+1} = x_0 * (W_l . x_l) + b_l + x_l
            acc_ref[...] = x_ref[...].astype(jnp.float32) * s + b + x_l
        o_ref[...] = acc_ref[...].astype(o_ref.dtype)

    return crossnet_kernel


def vector_cross_net(x, kernels, biases, *, tile_b: int | None = None):
    """x: [B, F]. kernels, biases: [L, F]. Returns [B, F] in x.dtype."""
    B, F = x.shape
    L, Fk = kernels.shape
    assert Fk == F and biases.shape == (L, F)

    io_dtype = x.dtype
    itemsize = jnp.dtype(io_dtype).itemsize
    F_pad = max(128, _round_up(F, 128))          # lane-dense features
    B_pad8 = max(8, _round_up(B, 8))             # sublane granularity

    if tile_b is None:
        # ~24 MiB budget for the double-buffered in+out batch tiles; F cannot
        # be tiled (the dot is a full-lane reduction), so only tile_b shrinks.
        tile_budget = 24 * 1024 * 1024
        tile_b = tile_budget // (4 * F_pad * itemsize)
        tile_b = max(8, min(1024, (tile_b // 8) * 8))
    tile_b = max(8, _round_up(min(tile_b, B_pad8), 8))
    # Keep >=2 batch blocks when possible so v7x's two TensorCores both work.
    if B_pad8 > 8 and (B_pad8 + tile_b - 1) // tile_b < 2:
        tile_b = max(8, _round_up((B_pad8 + 1) // 2, 8))

    grid_b = pl.cdiv(B, tile_b)
    B_pad = grid_b * tile_b

    # Zero-padding is semantics-preserving: padded lanes/rows contribute 0 to
    # the per-row dot and stay 0 through every layer; we slice them off below.
    x_p = x
    if (B_pad, F_pad) != (B, F):
        x_p = jnp.pad(x, ((0, B_pad - B), (0, F_pad - F)))
    k_p = kernels.astype(jnp.float32)
    b_p = biases.astype(jnp.float32)
    if F_pad != F:
        k_p = jnp.pad(k_p, ((0, 0), (0, F_pad - F)))
        b_p = jnp.pad(b_p, ((0, 0), (0, F_pad - F)))

    # VMEM: double-buffered in+out tiles + (tiny) params + f32 scratch + margin.
    tiles_bytes = 2 * 2 * tile_b * F_pad * itemsize
    params_bytes = 2 * 2 * L * F_pad * 4
    scratch_bytes = tile_b * F_pad * 4
    vmem_limit = min(
        48 * 1024 * 1024,
        max(16 * 1024 * 1024,
            int(1.5 * (tiles_bytes + params_bytes + scratch_bytes)) + (2 << 20)),
    )

    kernel = _make_crossnet_kernel(L)
    out = pl.pallas_call(
        kernel,
        out_shape=jax.ShapeDtypeStruct((B_pad, F_pad), io_dtype),
        grid_spec=pltpu.PrefetchScalarGridSpec(
            num_scalar_prefetch=0,
            grid=(grid_b,),
            in_specs=[
                pl.BlockSpec((tile_b, F_pad), lambda i: (i, 0)),   # x tile
                pl.BlockSpec((L, F_pad), lambda i: (0, 0)),        # all weights
                pl.BlockSpec((L, F_pad), lambda i: (0, 0)),        # all biases
            ],
            out_specs=pl.BlockSpec((tile_b, F_pad), lambda i: (i, 0)),
            scratch_shapes=[pltpu.VMEM((tile_b, F_pad), jnp.float32)],
        ),
        compiler_params=pltpu.CompilerParams(
            dimension_semantics=("parallel",),
            vmem_limit_bytes=vmem_limit,
        ),
        cost_estimate=pl.CostEstimate(
            flops=4 * L * B_pad * F_pad,
            transcendentals=0,
            bytes_accessed=2 * B_pad * F_pad * itemsize + 2 * L * F_pad * 4,
        ),
    )(x_p, k_p, b_p)

    if (B_pad, F_pad) != (B, F):
        out = out[:B, :F]
    return out


def vector_cross_net_ref(x, kernels, biases):
    """Pure-JAX reference matching the PyTorch forward exactly."""
    x0 = x
    xl = x0
    for l in range(kernels.shape[0]):
        s = jnp.sum(xl * kernels[l][None, :], axis=-1, keepdims=True)  # [B, 1]
        xl = x0 * s + biases[l][None, :] + xl
    return xl


if __name__ == "__main__":
    key = jax.random.PRNGKey(0)
    k_x, k_w, k_x2, k_w2 = jax.random.split(key, 4)

    # Case 1: aligned shapes (batch=16, in_features=128, num_layers=3).
    batch_size, in_features, num_layers = 16, 128, 3
    x = jax.random.normal(k_x, (batch_size, in_features), dtype=jnp.float32)
    # Parameter init mirroring the module: xavier_normal kernels, zero biases.
    xavier_std = jnp.sqrt(2.0 / (in_features + 1)).astype(jnp.float32)
    kernels = jax.random.normal(k_w, (num_layers, in_features), jnp.float32) * xavier_std
    biases = jnp.zeros((num_layers, in_features), dtype=jnp.float32)

    out = jax.block_until_ready(vector_cross_net(x, kernels, biases))
    ref = vector_cross_net_ref(x, kernels, biases)
    assert out.shape == (batch_size, in_features)
    assert jnp.allclose(out, ref, rtol=1e-5, atol=1e-5), "mismatch vs reference (aligned)"

    # Case 2: non-aligned shapes (batch=13, in_features=100) to exercise padding.
    B2, F2, L2 = 13, 100, 2
    x2 = jax.random.normal(k_x2, (B2, F2), dtype=jnp.float32)
    std2 = jnp.sqrt(2.0 / (F2 + 1)).astype(jnp.float32)
    kernels2 = jax.random.normal(k_w2, (L2, F2), jnp.float32) * std2
    biases2 = jnp.zeros((L2, F2), dtype=jnp.float32)

    out2 = jax.block_until_ready(vector_cross_net(x2, kernels2, biases2))
    ref2 = vector_cross_net_ref(x2, kernels2, biases2)
    assert out2.shape == (B2, F2)
    assert jnp.allclose(out2, ref2, rtol=1e-5, atol=1e-5), "mismatch vs reference (padded)"

    print("KERNEL_OK")
</pallas_src>

<mosaic_0001>
module attributes {stable_mosaic.version = 11 : i64} {
  func.func @crossnet_kernel(%arg0: i32, %arg1: memref<8x128xf32, #tpu.memory_space<vmem>>, %arg2: memref<3x128xf32, #tpu.memory_space<vmem>>, %arg3: memref<3x128xf32, #tpu.memory_space<vmem>>, %arg4: memref<8x128xf32, #tpu.memory_space<vmem>>, %arg5: memref<8x128xf32, #tpu.memory_space<vmem>>) attributes {dimension_semantics = [#tpu.dimension_semantics<parallel>], iteration_bounds = array<i64: 2>, scalar_prefetch = 0 : i64, scratch_operands = 1 : i64, tpu.core_type = #tpu.core_type<tc>, window_params = [{transform_indices = @transform_0, window_bounds = array<i64: 8, 128>}, {pipeline_mode = #tpu.pipeline_mode<synchronous>, transform_indices = @transform_1, window_bounds = array<i64: 3, 128>}, {pipeline_mode = #tpu.pipeline_mode<synchronous>, transform_indices = @transform_2, window_bounds = array<i64: 3, 128>}, {transform_indices = @transform_3, window_bounds = array<i64: 8, 128>}]} {
    %c0 = arith.constant 0 : index
    %c0_0 = arith.constant 0 : index
    %0 = vector.load %arg1[%c0, %c0_0] : memref<8x128xf32, #tpu.memory_space<vmem>>, vector<8x128xf32>
    %c0_1 = arith.constant 0 : index
    %c0_2 = arith.constant 0 : index
    %1 = vector.load %arg5[%c0_1, %c0_2] : memref<8x128xf32, #tpu.memory_space<vmem>>, vector<8x128xf32>
    tpu.vector_store %arg5[%c0_1, %c0_2], %0 {strides = array<i32>} : memref<8x128xf32, #tpu.memory_space<vmem>>, vector<8x128xf32>,
    %c0_3 = arith.constant 0 : index
    %c0_4 = arith.constant 0 : index
    %2 = vector.load %arg5[%c0_3, %c0_4] : memref<8x128xf32, #tpu.memory_space<vmem>>, vector<8x128xf32>
    %c0_5 = arith.constant 0 : index
    %c0_6 = arith.constant 0 : index
    %3 = vector.load %arg2[%c0_5, %c0_6] : memref<3x128xf32, #tpu.memory_space<vmem>>, vector<1x128xf32>
    %c0_7 = arith.constant 0 : index
    %c0_8 = arith.constant 0 : index
    %4 = vector.load %arg3[%c0_7, %c0_8] : memref<3x128xf32, #tpu.memory_space<vmem>>, vector<1x128xf32>
    %5 = vector.broadcast %3 : vector<1x128xf32> to vector<8x128xf32>
    %6 = arith.mulf %2, %5 : vector<8x128xf32>
    %cst = arith.constant dense<0.000000e+00> : vector<8xf32>
    %7 = vector.multi_reduction <add>, %6, %cst [1] : vector<8x128xf32> to vector<8xf32>
    %8 = vector.shape_cast %7 : vector<8xf32> to vector<8x1xf32>
    %c0_9 = arith.constant 0 : index
    %c0_10 = arith.constant 0 : index
    %9 = vector.load %arg1[%c0_9, %c0_10] : memref<8x128xf32, #tpu.memory_space<vmem>>, vector<8x128xf32>
    %10 = vector.broadcast %8 : vector<8x1xf32> to vector<8x128xf32>
    %11 = arith.mulf %9, %10 : vector<8x128xf32>
    %12 = vector.broadcast %4 : vector<1x128xf32> to vector<8x128xf32>
    %13 = arith.addf %11, %12 : vector<8x128xf32>
    %14 = arith.addf %13, %2 : vector<8x128xf32>
    %c0_11 = arith.constant 0 : index
    %c0_12 = arith.constant 0 : index
    %15 = vector.load %arg5[%c0_11, %c0_12] : memref<8x128xf32, #tpu.memory_space<vmem>>, vector<8x128xf32>
    tpu.vector_store %arg5[%c0_11, %c0_12], %14 {strides = array<i32>} : memref<8x128xf32, #tpu.memory_space<vmem>>, vector<8x128xf32>,
    %c0_13 = arith.constant 0 : index
    %c0_14 = arith.constant 0 : index
    %16 = vector.load %arg5[%c0_13, %c0_14] : memref<8x128xf32, #tpu.memory_space<vmem>>, vector<8x128xf32>
    %c1 = arith.constant 1 : index
    %c0_15 = arith.constant 0 : index
    %17 = vector.load %arg2[%c1, %c0_15] : memref<3x128xf32, #tpu.memory_space<vmem>>, vector<1x128xf32>
    %c1_16 = arith.constant 1 : index
    %c0_17 = arith.constant 0 : index
    %18 = vector.load %arg3[%c1_16, %c0_17] : memref<3x128xf32, #tpu.memory_space<vmem>>, vector<1x128xf32>
    %19 = vector.broadcast %17 : vector<1x128xf32> to vector<8x128xf32>
    %20 = arith.mulf %16, %19 : vector<8x128xf32>
    %cst_18 = arith.constant dense<0.000000e+00> : vector<8xf32>
    %21 = vector.multi_reduction <add>, %20, %cst_18 [1] : vector<8x128xf32> to vector<8xf32>
    %22 = vector.shape_cast %21 : vector<8xf32> to vector<8x1xf32>
    %c0_19 = arith.constant 0 : index
    %c0_20 = arith.constant 0 : index
    %23 = vector.load %arg1[%c0_19, %c0_20] : memref<8x128xf32, #tpu.memory_space<vmem>>, vector<8x128xf32>
    %24 = vector.broadcast %22 : vector<8x1xf32> to vector<8x128xf32>
    %25 = arith.mulf %23, %24 : vector<8x128xf32>
    %26 = vector.broadcast %18 : vector<1x128xf32> to vector<8x128xf32>
    %27 = arith.addf %25, %26 : vector<8x128xf32>
    %28 = arith.addf %27, %16 : vector<8x128xf32>
    %c0_21 = arith.constant 0 : index
    %c0_22 = arith.constant 0 : index
    %29 = vector.load %arg5[%c0_21, %c0_22] : memref<8x128xf32, #tpu.memory_space<vmem>>, vector<8x128xf32>
    tpu.vector_store %arg5[%c0_21, %c0_22], %28 {strides = array<i32>} : memref<8x128xf32, #tpu.memory_space<vmem>>, vector<8x128xf32>,
    %c0_23 = arith.constant 0 : index
    %c0_24 = arith.constant 0 : index
    %30 = vector.load %arg5[%c0_23, %c0_24] : memref<8x128xf32, #tpu.memory_space<vmem>>, vector<8x128xf32>
    %c2 = arith.constant 2 : index
    %c0_25 = arith.constant 0 : index
    %31 = vector.load %arg2[%c2, %c0_25] : memref<3x128xf32, #tpu.memory_space<vmem>>, vector<1x128xf32>
    %c2_26 = arith.constant 2 : index
    %c0_27 = arith.constant 0 : index
    %32 = vector.load %arg3[%c2_26, %c0_27] : memref<3x128xf32, #tpu.memory_space<vmem>>, vector<1x128xf32>
    %33 = vector.broadcast %31 : vector<1x128xf32> to vector<8x128xf32>
    %34 = arith.mulf %30, %33 : vector<8x128xf32>
    %cst_28 = arith.constant dense<0.000000e+00> : vector<8xf32>
    %35 = vector.multi_reduction <add>, %34, %cst_28 [1] : vector<8x128xf32> to vector<8xf32>
    %36 = vector.shape_cast %35 : vector<8xf32> to vector<8x1xf32>
    %c0_29 = arith.constant 0 : index
    %c0_30 = arith.constant 0 : index
    %37 = vector.load %arg1[%c0_29, %c0_30] : memref<8x128xf32, #tpu.memory_space<vmem>>, vector<8x128xf32>
    %38 = vector.broadcast %36 : vector<8x1xf32> to vector<8x128xf32>
    %39 = arith.mulf %37, %38 : vector<8x128xf32>
    %40 = vector.broadcast %32 : vector<1x128xf32> to vector<8x128xf32>
    %41 = arith.addf %39, %40 : vector<8x128xf32>
    %42 = arith.addf %41, %30 : vector<8x128xf32>
    %c0_31 = arith.constant 0 : index
    %c0_32 = arith.constant 0 : index
    %43 = vector.load %arg5[%c0_31, %c0_32] : memref<8x128xf32, #tpu.memory_space<vmem>>, vector<8x128xf32>
    tpu.vector_store %arg5[%c0_31, %c0_32], %42 {strides = array<i32>} : memref<8x128xf32, #tpu.memory_space<vmem>>, vector<8x128xf32>,
    %c0_33 = arith.constant 0 : index
    %c0_34 = arith.constant 0 : index
    %44 = vector.load %arg5[%c0_33, %c0_34] : memref<8x128xf32, #tpu.memory_space<vmem>>, vector<8x128xf32>
    %c0_35 = arith.constant 0 : index
    %c0_36 = arith.constant 0 : index
    %45 = vector.load %arg4[%c0_35, %c0_36] : memref<8x128xf32, #tpu.memory_space<vmem>>, vector<8x128xf32>
    tpu.vector_store %arg4[%c0_35, %c0_36], %44 {strides = array<i32>} : memref<8x128xf32, #tpu.memory_space<vmem>>, vector<8x128xf32>,
    return
  }
  func.func @transform_0(%arg0: i32) -> (i32, i32) {
    %c0_i32 = arith.constant 0 : i32
    %c0_i32_0 = arith.constant 0 : i32
    return %arg0, %c0_i32 : i32, i32
  }
  func.func @transform_1(%arg0: i32) -> (i32, i32) {
    %c0_i32 = arith.constant 0 : i32
    %c0_i32_0 = arith.constant 0 : i32
    %c0_i32_1 = arith.constant 0 : i32
    return %c0_i32, %c0_i32_0 : i32, i32
  }
  func.func @transform_2(%arg0: i32) -> (i32, i32) {
    %c0_i32 = arith.constant 0 : i32
    %c0_i32_0 = arith.constant 0 : i32
    %c0_i32_1 = arith.constant 0 : i32
    return %c0_i32, %c0_i32_0 : i32, i32
  }
  func.func @transform_3(%arg0: i32) -> (i32, i32) {
    %c0_i32 = arith.constant 0 : i32
    %c0_i32_0 = arith.constant 0 : i32
    return %arg0, %c0_i32 : i32, i32
  }
}

</mosaic_0001>

<llo_original>
// kernel: tpu_custom_call.1
$region0: #{tpu_custom_call.1}
  #allocation0 [shape = 'u32[]', space=smem, size = 0x4, offset = 0x4, fixed_abs, tag = 'smem constant byte address 0x4 - core index']
  #allocation1 [shape = 'u32[144,128]{1,0:T(1,128)}', space=vmem, size = 0x12000, scoped, tag = 'internal scratch']
  #allocation2 [shape = 'f32[8,128]{1,0:T(8,128)}', space=vmem, size = 0x1000, scoped, tag = 'scratch operand']
  %s0 = inlined_call_operand.hbm [shape: f32[16,128], index: 0, kind: input, shape index: {}]
  %s1 = inlined_call_operand.hbm [shape: f32[3,128], index: 1, kind: input, shape index: {}]
  %s2 = inlined_call_operand.vmem [shape: f32[3,128], index: 2, kind: input, shape index: {}]
  %s3 = inlined_call_operand.hbm [shape: f32[16,128], index: 3, kind: output, shape index: {}]
  %s4 = sld [smem:[#allocation0]]
  $region53: #{tpu_custom_call.1} parent=0
    _
  %s6 = ssub.s32 1, %s4
  %s7 = scalar_select 0, %s6, %s4
  $region1: #{tpu_custom_call.1} parent=0
    #allocation3 [shape = 'u8[8192]{0}', space=vmem, size = 0x2000, scoped, tag = 'input window, operand 0']
    #allocation4 [shape = 's32[2]{0}', space=sflag, size = 0x8, scoped, tag = 'scoped memory for tpu_custom_call.1']
    #allocation5 [shape = 's32[2]{0}', space=sflag, size = 0x8, scoped, tag = 'scoped memory for tpu_custom_call.1']
    #allocation6 [shape = 'u8[2048]{0}', space=vmem, size = 0x800, scoped, tag = 'input window, operand 1, single buffered']
    #allocation7 [shape = 's32[1]{0}', space=sflag, size = 0x4, scoped, tag = 'scoped memory for tpu_custom_call.1']
    #allocation8 [shape = 'u8[8192]{0}', space=vmem, size = 0x2000, scoped, tag = 'output window, operand 0']
    %8 = vsyncpa [#allocation4], 0
    %s9 = scalar_lea.sflag [#allocation4], 1
    %10 = vsyncpa %s9, 0
    %11 = vsyncpa [#allocation7], 0
    %12 = vsyncpa [#allocation5], 0
    %s13 = scalar_lea.sflag [#allocation5], 1
    %14 = vsyncpa %s13, 0
    loop: start=0, step=1, limit=4
    $region2: #{tpu_custom_call.1} parent=1 // loop_pre_header
      _
    $region3: #{tpu_custom_call.1} parent=1 // loop_header
      %s16 = sphi 0, %s20
      %p17 = scmp.ge.s32.totalorder %s16, 4
      %s26 = sphi 0, %s28
      %s29 = sphi 0, %s26
      %s30 = sphi 0, %s29
      %s46 = sphi 0, %s30
      %s50 = sphi 0, %s50
      %s52 = sphi 0, %s50
      %s53 = sphi 0, %s52
      %s67 = sphi 0, %s53
      %s71 = sphi 0, %s71
      %s73 = sphi 0, %s71
      %s74 = sphi 0, %s73
      %s88 = sphi 0, %s74
      %s94 = sphi 0, %s96
      %s97 = sphi 0, %s94
      %s98 = sphi 0, %s97
      %s114 = sphi 0, %s98
    $region4: #{tpu_custom_call.1} parent=1 // loop_header_branch
      %19 = sbr.rel (%p17) target = $region8
    $region5: #{tpu_custom_call.1} parent=1 // loop_body
      %s21 = ssub.s32 %s16, 1
      %s22 = ssub.s32 %s16, 2
      %s23 = sadd.s32 %s16, 1
      %s24 = ssub.s32 %s16, %s23
      %p25 = scmp.eq.s32.totalorder %s24, 0
      %s27 = sadd.s32 %s26, 1
      %s28 = scalar_select %p25, %s26, %s27
      %p31 = pneg %p25
      %p32 = scmp.eq.s32.totalorder %s16, 1
      %p33 = por %p31, %p32
      %p34 = scmp.ne.s32.totalorder %s26, %s29
      %p35 = scmp.eq.s32.totalorder %s16, 0
      %p36 = por %p34, %p35
      %p37 = scmp.ne.s32.totalorder %s26, %s29
      %p38 = scmp.eq.s32.totalorder %s21, 1
      %p39 = por %p37, %p38
      %p40 = scmp.ne.s32.totalorder %s29, %s30
      %p41 = scmp.eq.s32.totalorder %s21, 0
      %p42 = por %p40, %p41
      %p43 = scmp.ne.s32.totalorder %s29, %s30
      %p44 = scmp.eq.s32.totalorder %s22, 1
      %p45 = por %p43, %p44
      %p47 = scmp.ne.s32.totalorder %s30, %s46
      %p48 = scmp.eq.s32.totalorder %s22, 0
      %p49 = por %p47, %p48
      %s51 = sadd.s32 %s50, 1
      %p54 = scmp.eq.s32.totalorder %s16, 1
      %p55 = scmp.ne.s32.totalorder %s50, %s52
      %p56 = scmp.eq.s32.totalorder %s16, 0
      %p57 = por %p55, %p56
      %p58 = scmp.ne.s32.totalorder %s50, %s52
      %p59 = scmp.eq.s32.totalorder %s21, 1
      %p60 = por %p58, %p59
      %p61 = scmp.ne.s32.totalorder %s52, %s53
      %p62 = scmp.eq.s32.totalorder %s21, 0
      %p63 = por %p61, %p62
      %p64 = scmp.ne.s32.totalorder %s52, %s53
      %p65 = scmp.eq.s32.totalorder %s22, 1
      %p66 = por %p64, %p65
      %p68 = scmp.ne.s32.totalorder %s53, %s67
      %p69 = scmp.eq.s32.totalorder %s22, 0
      %p70 = por %p68, %p69
      %s72 = sadd.s32 %s71, 1
      %p75 = scmp.eq.s32.totalorder %s16, 1
      %p76 = scmp.ne.s32.totalorder %s71, %s73
      %p77 = scmp.eq.s32.totalorder %s16, 0
      %p78 = por %p76, %p77
      %p79 = scmp.ne.s32.totalorder %s71, %s73
      %p80 = scmp.eq.s32.totalorder %s21, 1
      %p81 = por %p79, %p80
      %p82 = scmp.ne.s32.totalorder %s73, %s74
      %p83 = scmp.eq.s32.totalorder %s21, 0
      %p84 = por %p82, %p83
      %p85 = scmp.ne.s32.totalorder %s73, %s74
      %p86 = scmp.eq.s32.totalorder %s22, 1
      %p87 = por %p85, %p86
      %p89 = scmp.ne.s32.totalorder %s74, %s88
      %p90 = scmp.eq.s32.totalorder %s22, 0
      %p91 = por %p89, %p90
      %s92 = ssub.s32 %s16, %s23
      %p93 = scmp.eq.s32.totalorder %s92, 0
      %s95 = sadd.s32 %s94, 1
      %s96 = scalar_select %p93, %s94, %s95
      %p99 = pneg %p93
      %p100 = scmp.eq.s32.totalorder %s16, 1
      %p101 = por %p99, %p100
      %p102 = scmp.ne.s32.totalorder %s94, %s97
      %p103 = scmp.eq.s32.totalorder %s16, 0
      %p104 = por %p102, %p103
      %p105 = scmp.ne.s32.totalorder %s94, %s97
      %p106 = scmp.eq.s32.totalorder %s21, 1
      %p107 = por %p105, %p106
      %p108 = scmp.ne.s32.totalorder %s97, %s98
      %p109 = scmp.eq.s32.totalorder %s21, 0
      %p110 = por %p108, %p109
      %p111 = scmp.ne.s32.totalorder %s97, %s98
      %p112 = scmp.eq.s32.totalorder %s22, 1
      %p113 = por %p111, %p112
      %p115 = scmp.ne.s32.totalorder %s98, %s114
      %p116 = scmp.eq.s32.totalorder %s22, 0
      %p117 = por %p115, %p116
      %p118 = scmp.le.s32.totalorder 1, %s16
      %p119 = scmp.lt.s32.totalorder %s16, 3
      %p120 = pnand %p118, %p119
      %p121 = pneg %p120
      // Predicated region
      $region9: #{tpu_custom_call.1} parent=5 // pred_check
        _
      $region10: #{tpu_custom_call.1} parent=5 // pred_check_branch
        %123 = sbr.rel (%p120) target = $region12
      $region11: #{tpu_custom_call.1} parent=5 // pred_region
        %s124 = ssub.s32 %s16, 1
        // Predicated region
        $region13: #{tpu_custom_call.1} parent=11 // pred_check
          %p125 = pneg %p63
        $region14: #{tpu_custom_call.1} parent=11 // pred_check_branch
          %127 = sbr.rel (%p125) target = $region16
        $region15: #{tpu_custom_call.1} parent=11 // pred_region
          %s129 = ssub.s32 64, 64
          %130 = vsyncadd [#allocation7], %s129
          %s132 = sshll.u32 [#allocation6], 4
          %s133 = int_to_ptr.vmem [resolvable:$true] %s132
          %135 = dma.hbm_to_vmem [thread:$0]  %s1, 64, %s133, [#allocation7]
        $region16: #{tpu_custom_call.1} parent=11 // pred_fallthru
          _
        // Predicated region
        $region17: #{tpu_custom_call.1} parent=11 // pred_check
          %p136 = pneg %p84
        $region18: #{tpu_custom_call.1} parent=11 // pred_check_branch
          %138 = sbr.rel (%p136) target = $region20
        $region19: #{tpu_custom_call.1} parent=11 // pred_region
          _
        $region20: #{tpu_custom_call.1} parent=11 // pred_fallthru
          _
      $region12: #{tpu_custom_call.1} parent=5 // pred_fallthru
        _
      %p139 = scmp.lt.s32.totalorder %s16, 2
      // Predicated region
      $region21: #{tpu_custom_call.1} parent=5 // pred_check
        %p140 = pneg %p139
      $region22: #{tpu_custom_call.1} parent=5 // pred_check_branch
        %142 = sbr.rel (%p140) target = $region24
      $region23: #{tpu_custom_call.1} parent=5 // pred_region
        // Predicated region
        $region25: #{tpu_custom_call.1} parent=23 // pred_check
          %p143 = pneg %p36
        $region26: #{tpu_custom_call.1} parent=23 // pred_check_branch
          %145 = sbr.rel (%p143) target = $region28
        $region27: #{tpu_custom_call.1} parent=23 // pred_region
          %s146 = sand.u32 %s26, 1
          %s147 = scalar_lea.sflag [#allocation4], %s146
          %s148 = sand.u32 %s26, 1
          %s149 = smul.addr %s148, 8
          %s150 = scalar_lea.vmem [#allocation3], %s149
          %s152 = ssub.s32 128, 128
          %153 = vsyncadd %s147, %s152
          %s154 = smul.addr %s16, 128
          %s155 = scalar_lea.hbm %s0, %s154
          %s157 = sshll.u32 %s150, 4
          %s158 = int_to_ptr.vmem [resolvable:$true] %s157
          %160 = dma.hbm_to_vmem [thread:$0]  %s155, 128, %s158, %s147
        $region28: #{tpu_custom_call.1} parent=23 // pred_fallthru
          _
      $region24: #{tpu_custom_call.1} parent=5 // pred_fallthru
        _
      %p161 = scmp.le.s32.totalorder 1, %s16
      %p162 = scmp.lt.s32.totalorder %s16, 3
      %p163 = pnand %p161, %p162
      %p164 = pneg %p163
      // Predicated region
      $region29: #{tpu_custom_call.1} parent=5 // pred_check
        _
      $region30: #{tpu_custom_call.1} parent=5 // pred_check_branch
        %166 = sbr.rel (%p163) target = $region32
      $region31: #{tpu_custom_call.1} parent=5 // pred_region
        %s167 = ssub.s32 %s16, 1
        %s168 = sand.u32 %s29, 1
        %s169 = scalar_lea.sflag [#allocation4], %s168
        %s170 = sand.u32 %s29, 1
        %s171 = smul.addr %s170, 8
        %s172 = scalar_lea.vmem [#allocation3], %s171
        // Predicated region
        $region33: #{tpu_custom_call.1} parent=31 // pred_check
          %p173 = pneg %p42
        $region34: #{tpu_custom_call.1} parent=31 // pred_check_branch
          %175 = sbr.rel (%p173) target = $region36
        $region35: #{tpu_custom_call.1} parent=31 // pred_region
          %176 = dma.done %s169, 128
        $region36: #{tpu_custom_call.1} parent=31 // pred_fallthru
          _
        // Predicated region
        $region37: #{tpu_custom_call.1} parent=31 // pred_check
          %p177 = pneg %p63
        $region38: #{tpu_custom_call.1} parent=31 // pred_check_branch
          %179 = sbr.rel (%p177) target = $region40
        $region39: #{tpu_custom_call.1} parent=31 // pred_region
          %180 = dma.done [#allocation7], 64
        $region40: #{tpu_custom_call.1} parent=31 // pred_fallthru
          _
        %s181 = sand.u32 %s29, 1
        %s182 = scalar_lea.sflag [#allocation4], %s181
        %s183 = sand.u32 %s29, 1
        %s184 = smul.addr %s183, 8
        %s185 = scalar_lea.vmem [#allocation3], %s184
        %p186 = pneg %p42
        %p187 = pneg %p39
        %p188 = pneg %p63
        %p189 = pneg %p60
        %p190 = pneg %p84
        %p191 = pneg %p81
        %p192 = pneg %p110
        %p193 = pneg %p107
        %s194 = sand.u32 %s97, 1
        %s195 = scalar_lea.sflag [#allocation5], %s194
        %s196 = sand.u32 %s97, 1
        %s197 = smul.addr %s196, 8
        %s198 = scalar_lea.vmem [#allocation8], %s197
        %v199 = vld [vmem:[%s172] sm:$0xff]
        %200 = vst [vmem:[#allocation2] sm:$0xff] %v199
        %v201 = vld [vmem:[#allocation2] sm:$0xff]
        %v202 = vld [vmem:[#allocation6] sm:$0x1]
        %v203 = vld [vmem:[%s2] sm:$0x1]
        %v204 = vlaneseq
        %v205 = vshrl.u32 %v204, 7
        %v206 = vsub.s32 0, %v205
        %v207 = vrot.slane %v202, %v206
        %v208 = vmul.f32 %v201, %v207
        %209 = vadd.xlane.f32.xlu0 %v208
        %v210 = vpop.xlane.xlu0 %209
        %v211 = vld [vmem:[%s172] sm:$0xff]
        %v212 = vmul.f32 %v211, %v210
        %v213 = vlaneseq
        %v214 = vshrl.u32 %v213, 7
        %v215 = vsub.s32 0, %v214
        %v216 = vrot.slane %v203, %v215
        %v217 = vadd.f32 %v212, %v216
        %v218 = vadd.f32 %v217, %v201
        %219 = vst [vmem:[#allocation2] sm:$0xff] %v218
        %v220 = vld [vmem:[#allocation2] sm:$0xff]
        %v221 = vld [vmem:[#allocation6 + $0x1] sm:$0x1]
        %v222 = vld [vmem:[%s2 + $0x1] sm:$0x1]
        %v223 = vlaneseq
        %v224 = vshrl.u32 %v223, 7
        %v225 = vsub.s32 0, %v224
        %v226 = vrot.slane %v221, %v225
        %v227 = vmul.f32 %v220, %v226
        %228 = vadd.xlane.f32.xlu0 %v227
        %v229 = vpop.xlane.xlu0 %228
        %v230 = vld [vmem:[%s172] sm:$0xff]
        %v231 = vmul.f32 %v230, %v229
        %v232 = vlaneseq
        %v233 = vshrl.u32 %v232, 7
        %v234 = vsub.s32 0, %v233
        %v235 = vrot.slane %v222, %v234
        %v236 = vadd.f32 %v231, %v235
        %v237 = vadd.f32 %v236, %v220
        %238 = vst [vmem:[#allocation2] sm:$0xff] %v237
        %v239 = vld [vmem:[#allocation2] sm:$0xff]
        %v240 = vld [vmem:[#allocation6 + $0x2] sm:$0x1]
        %v241 = vld [vmem:[%s2 + $0x2] sm:$0x1]
        %v242 = vlaneseq
        %v243 = vshrl.u32 %v242, 7
        %v244 = vsub.s32 0, %v243
        %v245 = vrot.slane %v240, %v244
        %v246 = vmul.f32 %v239, %v245
        %247 = vadd.xlane.f32.xlu0 %v246
        %v248 = vpop.xlane.xlu0 %247
        %v249 = vld [vmem:[%s172] sm:$0xff]
        %v250 = vmul.f32 %v249, %v248
        %v251 = vlaneseq
        %v252 = vshrl.u32 %v251, 7
        %v253 = vsub.s32 0, %v252
        %v254 = vrot.slane %v241, %v253
        %v255 = vadd.f32 %v250, %v254
        %v256 = vadd.f32 %v255, %v239
        %257 = vst [vmem:[#allocation2] sm:$0xff] %v256
        %v258 = vld [vmem:[#allocation2] sm:$0xff]
        %259 = vst [vmem:[%s198] sm:$0xff] %v258
        %s260 = sand.u32 %s97, 1
        %s261 = scalar_lea.sflag [#allocation5], %s260
        %s262 = sand.u32 %s97, 1
        %s263 = smul.addr %s262, 8
        %s264 = scalar_lea.vmem [#allocation8], %s263
        // Predicated region
        $region41: #{tpu_custom_call.1} parent=31 // pred_check
          %p265 = pneg %p107
        $region42: #{tpu_custom_call.1} parent=31 // pred_check_branch
          %267 = sbr.rel (%p265) target = $region44
        $region43: #{tpu_custom_call.1} parent=31 // pred_region
          %s269 = ssub.s32 128, 128
          %270 = vsyncadd %s261, %s269
          %s271 = smul.addr %s21, 128
          %s272 = scalar_lea.hbm %s3, %s271
          %s274 = sshll.u32 %s264, 4
          %s275 = int_to_ptr.vmem [resolvable:$true] %s274
          %277 = dma.vmem_to_hbm [thread:$0]  %s275, 128, %s272, %s261
        $region44: #{tpu_custom_call.1} parent=31 // pred_fallthru
          _
      $region32: #{tpu_custom_call.1} parent=5 // pred_fallthru
        _
      %p278 = scmp.le.s32.totalorder 2, %s16
      // Predicated region
      $region45: #{tpu_custom_call.1} parent=5 // pred_check
        %p279 = pneg %p278
      $region46: #{tpu_custom_call.1} parent=5 // pred_check_branch
        %281 = sbr.rel (%p279) target = $region48
      $region47: #{tpu_custom_call.1} parent=5 // pred_region
        %s282 = ssub.s32 %s16, 2
        // Predicated region
        $region49: #{tpu_custom_call.1} parent=47 // pred_check
          %p283 = pneg %p113
        $region50: #{tpu_custom_call.1} parent=47 // pred_check_branch
          %285 = sbr.rel (%p283) target = $region52
        $region51: #{tpu_custom_call.1} parent=47 // pred_region
          %s286 = sand.u32 %s98, 1
          %s287 = scalar_lea.sflag [#allocation5], %s286
          %s288 = sand.u32 %s98, 1
          %s289 = smul.addr %s288, 8
          %s290 = scalar_lea.vmem [#allocation8], %s289
          %291 = dma.done %s287, 128
        $region52: #{tpu_custom_call.1} parent=47 // pred_fallthru
          _
      $region48: #{tpu_custom_call.1} parent=5 // pred_fallthru
        _
    $region6: #{tpu_custom_call.1} parent=1 // loop_footer
      %s20 = sadd.s32 1, %s16
    $region7: #{tpu_custom_call.1} parent=1 // loop_footer_branch
      %15 = sbr.rel target = $region3
    $region8: #{tpu_custom_call.1} parent=1 // loop_exit
      _
    %292 = vsyncpa [#allocation4], 1
    %s293 = scalar_lea.sflag [#allocation4], 1
    %294 = vsyncpa %s293, 1
    %295 = vsyncpa [#allocation7], 1
    %296 = vsyncpa [#allocation5], 1
    %s297 = scalar_lea.sflag [#allocation5], 1
    %298 = vsyncpa %s297, 1

</llo_original>
